<compile_context>
chip_gen: v6e
topology: v6e:2x2x1
jax: 0.10.0
libtpu: 0.0.40
codegen_flags: <defaults>
</compile_context>

<pallas_src>
import math

import jax
import jax.numpy as jnp
from jax.experimental import pallas as pl
from jax.experimental.pallas import tpu as pltpu


def _round_up(v, m):
    return ((v + m - 1) // m) * m


def _transpose_tile_kernel(x_ref, o_ref):
    # x_ref: (TM, TN) tile, o_ref: (TN, TM) tile — XLU minor-dim transpose.
    o_ref[...] = jnp.swapaxes(x_ref[...], 0, 1)


def _batched_transpose(x3):
    """(B, M, N) -> (B, N, M) as a tiled Pallas transpose kernel."""
    B, M, N = x3.shape
    # 128-aligned tiles in both orientations (lane-dense DMA on load & store),
    # capped at 512: in+out tiles double-buffered stay ~4 MiB of VMEM.
    tm = min(_round_up(M, 128), 512)
    tn = min(_round_up(N, 128), 512)
    grid = (B, pl.cdiv(M, tm), pl.cdiv(N, tn))
    return pl.pallas_call(
        _transpose_tile_kernel,
        out_shape=jax.ShapeDtypeStruct((B, N, M), x3.dtype),
        grid_spec=pltpu.PrefetchScalarGridSpec(
            num_scalar_prefetch=0,
            grid=grid,
            in_specs=[pl.BlockSpec((None, tm, tn), lambda b, i, j: (b, i, j))],
            out_specs=pl.BlockSpec((None, tn, tm), lambda b, i, j: (b, j, i)),
        ),
        compiler_params=pltpu.CompilerParams(
            # Disjoint output blocks -> fully parallel; v7x shards over 2 TCs.
            dimension_semantics=("parallel", "parallel", "parallel"),
        ),
    )(x3)


def permute_pallas(x, dims_list):
    """Reproduces Permute(dims_list).forward(x) semantics on TPU."""
    dims = tuple(int(d) for d in dims_list)
    rank = x.ndim
    if sorted(dims) != list(range(rank)):
        raise RuntimeError(f"dims_list {dims_list} is not a permutation of {rank} axes")
    out_shape = tuple(x.shape[d] for d in dims)

    # ---- canonicalize: drop size-1 axes (metadata-only) --------------------
    keep = [a for a in range(rank) if x.shape[a] != 1]
    if not keep:
        return jnp.reshape(x, out_shape)
    remap = {a: i for i, a in enumerate(keep)}
    sq_shape = [x.shape[a] for a in keep]
    sq_perm = [remap[a] for a in dims if a in remap]

    # ---- merge runs of axes that stay adjacent & in order ------------------
    groups = []
    for a in sq_perm:
        if groups and a == groups[-1][-1] + 1:
            groups[-1].append(a)
        else:
            groups.append([a])
    groups_in_input_order = sorted(groups, key=lambda g: g[0])
    sizes = [math.prod(sq_shape[a] for a in g) for g in groups_in_input_order]
    red_perm = [groups_in_input_order.index(g) for g in groups]
    r = len(red_perm)

    cur = jnp.reshape(x, sizes)          # metadata-only on a contiguous array
    if red_perm == list(range(r)):
        # Pure view (e.g. identity permutation): no data movement, no kernel.
        return jnp.reshape(cur, out_shape)

    # ---- decompose into "move one axis to the end" steps -------------------
    # Keep the longest already-ordered prefix of the target order; every other
    # target axis is moved to the end (in target order).  Each move reshapes to
    # (P, A, Q) and runs one batched 2-D transpose Pallas kernel -> (P, Q, A).
    k = 1
    while k < r and red_perm[k] > red_perm[k - 1]:
        k += 1

    cur_ids = list(range(r))
    for axis_id in red_perm[k:]:
        j = cur_ids.index(axis_id)
        if j == r - 1:
            continue                      # already in place
        shp = cur.shape
        p = math.prod(shp[:j])
        a = shp[j]
        q = math.prod(shp[j + 1:])
        moved = _batched_transpose(jnp.reshape(cur, (p, a, q)))
        cur_ids = cur_ids[:j] + cur_ids[j + 1:] + [axis_id]
        cur = jnp.reshape(moved, [sizes[i] for i in cur_ids])

    assert cur_ids == red_perm
    return jnp.reshape(cur, out_shape)


if __name__ == "__main__":
    key = jax.random.PRNGKey(0)
    x = jax.random.normal(key, (2, 4, 16, 16), dtype=jnp.float32)  # NCHW

    test_perms = [
        (0, 2, 3, 1),   # NCHW -> NHWC : exactly one Pallas transpose call
        (0, 3, 1, 2),   # NHWC -> NCHW style move : one call
        (1, 0, 2, 3),   # swap leading axes : two calls
        (3, 2, 1, 0),   # full reversal : three calls
        (0, 1, 2, 3),   # identity : pure view, no kernel (per perf review)
    ]

    ok = True
    for dims in test_perms:
        out = jax.block_until_ready(permute_pallas(x, dims))
        ref = jnp.transpose(x, dims)
        if out.shape != ref.shape or out.dtype != ref.dtype:
            ok = False
        if not bool(jnp.array_equal(out, ref)):
            ok = False

    if ok:
        print("KERNEL_OK")
</pallas_src>

<mosaic_0001>
module attributes {stable_mosaic.version = 11 : i64} {
  func.func @_transpose_tile_kernel(%arg0: i32, %arg1: i32, %arg2: i32, %arg3: memref<1x128x256xf32, #tpu.memory_space<vmem>>, %arg4: memref<1x256x128xf32, #tpu.memory_space<vmem>>) attributes {dimension_semantics = [#tpu.dimension_semantics<parallel>, #tpu.dimension_semantics<parallel>, #tpu.dimension_semantics<parallel>], iteration_bounds = array<i64: 2, 1, 1>, scalar_prefetch = 0 : i64, scratch_operands = 0 : i64, tpu.core_type = #tpu.core_type<tc>, window_params = [{transform_indices = @transform_0, window_bounds = array<i64: 1, 128, 256>}, {transform_indices = @transform_1, window_bounds = array<i64: 1, 256, 128>}]} {
    %c0 = arith.constant 0 : index
    %c0_0 = arith.constant 0 : index
    %c0_1 = arith.constant 0 : index
    %0 = vector.load %arg3[%c0, %c0_0, %c0_1] : memref<1x128x256xf32, #tpu.memory_space<vmem>>, vector<1x128x256xf32>
    %1 = vector.shape_cast %0 : vector<1x128x256xf32> to vector<128x256xf32>
    %2 = tpu.transpose %1, [1, 0] : vector<128x256xf32> -> vector<256x128xf32>
    %c0_2 = arith.constant 0 : index
    %c0_3 = arith.constant 0 : index
    %c0_4 = arith.constant 0 : index
    %3 = vector.load %arg4[%c0_2, %c0_3, %c0_4] : memref<1x256x128xf32, #tpu.memory_space<vmem>>, vector<1x256x128xf32>
    %4 = vector.shape_cast %3 : vector<1x256x128xf32> to vector<256x128xf32>
    %5 = vector.shape_cast %2 : vector<256x128xf32> to vector<1x256x128xf32>
    tpu.vector_store %arg4[%c0_2, %c0_3, %c0_4], %5 {strides = array<i32>} : memref<1x256x128xf32, #tpu.memory_space<vmem>>, vector<1x256x128xf32>,
    return
  }
  func.func @transform_0(%arg0: i32, %arg1: i32, %arg2: i32) -> (i32, i32, i32) {
    %c0_i32 = arith.constant 0 : i32
    return %arg0, %arg1, %arg2 : i32, i32, i32
  }
  func.func @transform_1(%arg0: i32, %arg1: i32, %arg2: i32) -> (i32, i32, i32) {
    %c0_i32 = arith.constant 0 : i32
    return %arg0, %arg2, %arg1 : i32, i32, i32
  }
}

</mosaic_0001>

<llo_original>
// kernel: tpu_custom_call.1
$region0: #{tpu_custom_call.1}
  #allocation0 [shape = 'u32[]', space=smem, size = 0x4, offset = 0x4, fixed_abs, tag = 'smem constant byte address 0x4 - core index']
  #allocation1 [shape = 'u32[144,128]{1,0:T(1,128)}', space=vmem, size = 0x12000, scoped, tag = 'internal scratch']
  %s0 = inlined_call_operand.hbm [shape: f32[2,4,256], index: 0, kind: input, shape index: {}]
  %s1 = inlined_call_operand.vmem [shape: f32[2,256,4], index: 1, kind: output, shape index: {}]
  %s2 = sld [smem:[#allocation0]]
  $region41: #{tpu_custom_call.1} parent=0
    _
  %s4 = ssub.s32 1, %s2
  %s5 = scalar_select 0, %s4, %s2
  $region1: #{tpu_custom_call.1} parent=0
    #allocation2 [shape = 'u8[262144]{0}', space=vmem, size = 0x40000, scoped, tag = 'input window, operand 0']
    #allocation3 [shape = 's32[2]{0}', space=sflag, size = 0x8, scoped, tag = 'scoped memory for tpu_custom_call.1']
    %6 = vsyncpa [#allocation3], 0
    %s7 = scalar_lea.sflag [#allocation3], 1
    %8 = vsyncpa %s7, 0
    loop: start=0, step=1, limit=4
    $region2: #{tpu_custom_call.1} parent=1 // loop_pre_header
      _
    $region3: #{tpu_custom_call.1} parent=1 // loop_header
      %s10 = sphi 0, %s14
      %p11 = scmp.ge.s32.totalorder %s10, 4
      %s17 = sphi 0, %s36
      %s18 = sphi 0, %s32
      %s19 = sphi 0, %s28
      %s20 = sphi 0, %s17
      %s21 = sphi 0, %s18
      %s22 = sphi 0, %s19
      %s23 = sphi 0, %s20
      %s24 = sphi 0, %s21
      %s25 = sphi 0, %s22
      %s43 = sphi 0, %s45
      %s46 = sphi 0, %s43
      %s47 = sphi 0, %s46
      %s63 = sphi 0, %s47
      %s73 = sphi 0, %s75
      %s76 = sphi 0, %s73
      %s77 = sphi 0, %s76
      %s93 = sphi 0, %s77
    $region4: #{tpu_custom_call.1} parent=1 // loop_header_branch
      %13 = sbr.rel (%p11) target = $region8
    $region5: #{tpu_custom_call.1} parent=1 // loop_body
      %s15 = ssub.s32 %s10, 1
      %s16 = ssub.s32 %s10, 2
      %s26 = sadd.s32 1, %s19
      %p27 = scmp.ge.s32.totalorder %s26, 1
      %s28 = scalar_select %p27, 0, %s26
      %s29 = sadd.s32 1, %s18
      %s30 = scalar_select %p27, %s29, %s18
      %p31 = scmp.ge.s32.totalorder %s30, 1
      %s32 = scalar_select %p31, 0, %s30
      %s33 = sadd.s32 1, %s17
      %s34 = scalar_select %p31, %s33, %s17
      %p35 = scmp.ge.s32.totalorder %s34, 2
      %s36 = scalar_select %p35, 0, %s34
      %s37 = ssub.s32 %s17, %s36
      %s38 = ssub.s32 %s18, %s32
      %s39 = sor.u32 %s37, %s38
      %s40 = ssub.s32 %s19, %s28
      %s41 = sor.u32 %s39, %s40
      %p42 = scmp.eq.s32.totalorder %s41, 0
      %s44 = sadd.s32 %s43, 1
      %s45 = scalar_select %p42, %s43, %s44
      %p48 = pneg %p42
      %p49 = scmp.eq.s32.totalorder %s10, 1
      %p50 = por %p48, %p49
      %p51 = scmp.ne.s32.totalorder %s43, %s46
      %p52 = scmp.eq.s32.totalorder %s10, 0
      %p53 = por %p51, %p52
      %p54 = scmp.ne.s32.totalorder %s43, %s46
      %p55 = scmp.eq.s32.totalorder %s15, 1
      %p56 = por %p54, %p55
      %p57 = scmp.ne.s32.totalorder %s46, %s47
      %p58 = scmp.eq.s32.totalorder %s15, 0
      %p59 = por %p57, %p58
      %p60 = scmp.ne.s32.totalorder %s46, %s47
      %p61 = scmp.eq.s32.totalorder %s16, 1
      %p62 = por %p60, %p61
      %p64 = scmp.ne.s32.totalorder %s47, %s63
      %p65 = scmp.eq.s32.totalorder %s16, 0
      %p66 = por %p64, %p65
      %s67 = ssub.s32 %s17, %s36
      %s68 = ssub.s32 %s19, %s28
      %s69 = sor.u32 %s67, %s68
      %s70 = ssub.s32 %s18, %s32
      %s71 = sor.u32 %s69, %s70
      %p72 = scmp.eq.s32.totalorder %s71, 0
      %s74 = sadd.s32 %s73, 1
      %s75 = scalar_select %p72, %s73, %s74
      %p78 = pneg %p72
      %p79 = scmp.eq.s32.totalorder %s10, 1
      %p80 = por %p78, %p79
      %p81 = scmp.ne.s32.totalorder %s73, %s76
      %p82 = scmp.eq.s32.totalorder %s10, 0
      %p83 = por %p81, %p82
      %p84 = scmp.ne.s32.totalorder %s73, %s76
      %p85 = scmp.eq.s32.totalorder %s15, 1
      %p86 = por %p84, %p85
      %p87 = scmp.ne.s32.totalorder %s76, %s77
      %p88 = scmp.eq.s32.totalorder %s15, 0
      %p89 = por %p87, %p88
      %p90 = scmp.ne.s32.totalorder %s76, %s77
      %p91 = scmp.eq.s32.totalorder %s16, 1
      %p92 = por %p90, %p91
      %p94 = scmp.ne.s32.totalorder %s77, %s93
      %p95 = scmp.eq.s32.totalorder %s16, 0
      %p96 = por %p94, %p95
      %p97 = scmp.le.s32.totalorder 1, %s10
      %p98 = scmp.lt.s32.totalorder %s10, 3
      %p99 = pnand %p97, %p98
      %p100 = pneg %p99
      // Predicated region
      $region9: #{tpu_custom_call.1} parent=5 // pred_check
        _
      $region10: #{tpu_custom_call.1} parent=5 // pred_check_branch
        %102 = sbr.rel (%p99) target = $region12
      $region11: #{tpu_custom_call.1} parent=5 // pred_region
        %s103 = ssub.s32 %s10, 1
      $region12: #{tpu_custom_call.1} parent=5 // pred_fallthru
        _
      %p104 = scmp.lt.s32.totalorder %s10, 2
      // Predicated region
      $region13: #{tpu_custom_call.1} parent=5 // pred_check
        %p105 = pneg %p104
      $region14: #{tpu_custom_call.1} parent=5 // pred_check_branch
        %107 = sbr.rel (%p105) target = $region16
      $region15: #{tpu_custom_call.1} parent=5 // pred_region
        // Predicated region
        $region17: #{tpu_custom_call.1} parent=15 // pred_check
          %p108 = pneg %p53
        $region18: #{tpu_custom_call.1} parent=15 // pred_check_branch
          %110 = sbr.rel (%p108) target = $region20
        $region19: #{tpu_custom_call.1} parent=15 // pred_region
          %s111 = sand.u32 %s43, 1
          %s112 = scalar_lea.sflag [#allocation3], %s111
          %s113 = sand.u32 %s43, 1
          %s114 = smul.addr %s113, 256
          %s115 = scalar_lea.vmem [#allocation2], %s114
          %s116 = smul.u32 32, %s18
          %s117 = smul.u32 2, %s19
          %s118 = ssub.s32 1, %s116
          %s119 = smul.u32 64, %s118
          %s120 = smul.u32 %s119, 2
          %s122 = ssub.s32 4096, %s120
          %123 = vsyncadd %s112, %s122
          %p124 = scmp.ne.s32.totalorder 0, %s120
          %s125 = smul.addr %s116, 2
          %s126 = sadd.s32 %s117, %s125
          %s127 = smul.addr %s17, 2
          %s128 = sadd.s32 %s126, %s127
          %s129 = smul.addr %s128, 64
          %s130 = scalar_lea.hbm %s0, %s129
          %s131 = smul.u32 8, %s118
          %s132 = sshll.u32 %s115, 4
          %s133 = int_to_ptr.vmem [resolvable:$true] %s132
          %s134 = sshll.u32 %s131, 4
          %138 = dma.hbm_to_vmem [thread:$0]  (%p124), %s130, %s134, %s133, %s112, 128, 128, 8
        $region20: #{tpu_custom_call.1} parent=15 // pred_fallthru
          _
      $region16: #{tpu_custom_call.1} parent=5 // pred_fallthru
        _
      %p139 = scmp.le.s32.totalorder 1, %s10
      %p140 = scmp.lt.s32.totalorder %s10, 3
      %p141 = pnand %p139, %p140
      %p142 = pneg %p141
      // Predicated region
      $region21: #{tpu_custom_call.1} parent=5 // pred_check
        _
      $region22: #{tpu_custom_call.1} parent=5 // pred_check_branch
        %144 = sbr.rel (%p141) target = $region24
      $region23: #{tpu_custom_call.1} parent=5 // pred_region
        %s145 = ssub.s32 %s10, 1
        %s146 = sand.u32 %s46, 1
        %s147 = scalar_lea.sflag [#allocation3], %s146
        %s148 = sand.u32 %s46, 1
        %s149 = smul.addr %s148, 256
        %s150 = scalar_lea.vmem [#allocation2], %s149
        // Predicated region
        $region25: #{tpu_custom_call.1} parent=23 // pred_check
          %p151 = pneg %p59
        $region26: #{tpu_custom_call.1} parent=23 // pred_check_branch
          %153 = sbr.rel (%p151) target = $region28
        $region27: #{tpu_custom_call.1} parent=23 // pred_region
          %154 = dma.done %s147, 4096
        $region28: #{tpu_custom_call.1} parent=23 // pred_fallthru
          _
        %s155 = sand.u32 %s46, 1
        %s156 = scalar_lea.sflag [#allocation3], %s155
        %s157 = sand.u32 %s46, 1
        %s158 = smul.addr %s157, 256
        %s159 = scalar_lea.vmem [#allocation2], %s158
        %p160 = pneg %p59
        %p161 = pneg %p56
        %p162 = pneg %p89
        %p163 = pneg %p86
        %s164 = smul.u32 32, %s22
        %p165 = scmp.lt.s32.totalorder %s20, 1
        %s166 = scalar_select %p165, %s20, 1
        %p167 = scmp.lt.s32.totalorder %s164, 31
        %s168 = scalar_select %p167, %s164, 31
        %p169 = scmp.lt.s32.totalorder %s21, 0
        %s170 = scalar_select %p169, %s21, 0
        %s171 = sadd.s32 %s170, %s168
        %s172 = smul.addr %s166, 32
        %s173 = sadd.s32 %s171, %s172
        %s174 = smul.addr %s173, 8
        %s175 = scalar_lea.vmem %s1, %s174
        %s176 = smul.u32 32, %s21
        %s177 = smul.u32 2, %s22
        %s178 = ssub.s32 1, %s176
        %s179 = smul.u32 64, %s178
        %s180 = smul.u32 %s179, 2
        %s181 = smul.u32 32, %s22
        %p182 = scmp.lt.s32.totalorder %s20, 1
        %s183 = scalar_select %p182, %s20, 1
        %p184 = scmp.lt.s32.totalorder %s181, 31
        %s185 = scalar_select %p184, %s181, 31
        %p186 = scmp.lt.s32.totalorder %s21, 0
        %s187 = scalar_select %p186, %s21, 0
        %s188 = sadd.s32 %s187, %s185
        %s189 = smul.addr %s183, 32
        %s190 = sadd.s32 %s188, %s189
        %s191 = smul.addr %s190, 8
        %s192 = scalar_lea.vmem %s1, %s191
        %s193 = smul.u32 32, %s22
        %v194 = vld [vmem:[%s150] sm:$0xff]
        %v195 = vld [vmem:[%s150 + $0x8] sm:$0xff]
        %v196 = vld [vmem:[%s150 + $0x10] sm:$0xff]
        %v197 = vld [vmem:[%s150 + $0x18] sm:$0xff]
        %v198 = vld [vmem:[%s150 + $0x20] sm:$0xff]
        %v199 = vld [vmem:[%s150 + $0x28] sm:$0xff]
        %v200 = vld [vmem:[%s150 + $0x30] sm:$0xff]
        %v201 = vld [vmem:[%s150 + $0x38] sm:$0xff]
        %v202 = vld [vmem:[%s150 + $0x40] sm:$0xff]
        %v203 = vld [vmem:[%s150 + $0x48] sm:$0xff]
        %v204 = vld [vmem:[%s150 + $0x50] sm:$0xff]
        %v205 = vld [vmem:[%s150 + $0x58] sm:$0xff]
        %v206 = vld [vmem:[%s150 + $0x60] sm:$0xff]
        %v207 = vld [vmem:[%s150 + $0x68] sm:$0xff]
        %v208 = vld [vmem:[%s150 + $0x70] sm:$0xff]
        %v209 = vld [vmem:[%s150 + $0x78] sm:$0xff]
        %v210 = vld [vmem:[%s150 + $0x80] sm:$0xff]
        %v211 = vld [vmem:[%s150 + $0x88] sm:$0xff]
        %v212 = vld [vmem:[%s150 + $0x90] sm:$0xff]
        %v213 = vld [vmem:[%s150 + $0x98] sm:$0xff]
        %v214 = vld [vmem:[%s150 + $0xa0] sm:$0xff]
        %v215 = vld [vmem:[%s150 + $0xa8] sm:$0xff]
        %v216 = vld [vmem:[%s150 + $0xb0] sm:$0xff]
        %v217 = vld [vmem:[%s150 + $0xb8] sm:$0xff]
        %v218 = vld [vmem:[%s150 + $0xc0] sm:$0xff]
        %v219 = vld [vmem:[%s150 + $0xc8] sm:$0xff]
        %v220 = vld [vmem:[%s150 + $0xd0] sm:$0xff]
        %v221 = vld [vmem:[%s150 + $0xd8] sm:$0xff]
        %v222 = vld [vmem:[%s150 + $0xe0] sm:$0xff]
        %v223 = vld [vmem:[%s150 + $0xe8] sm:$0xff]
        %v224 = vld [vmem:[%s150 + $0xf0] sm:$0xff]
        %v225 = vld [vmem:[%s150 + $0xf8] sm:$0xff]
        %v258 = vcombine.low %v194, %v195
        %v259 = vcombine.high %v194, %v195
        %v260 = vcombine.low %v196, %v197
        %v261 = vcombine.high %v196, %v197
        %v262 = vcombine.low %v198, %v199
        %v263 = vcombine.high %v198, %v199
        %v264 = vcombine.low %v200, %v201
        %v265 = vcombine.high %v200, %v201
        %v266 = vcombine.low %v202, %v203
        %v267 = vcombine.high %v202, %v203
        %v268 = vcombine.low %v204, %v205
        %v269 = vcombine.high %v204, %v205
        %v270 = vcombine.low %v206, %v207
        %v271 = vcombine.high %v206, %v207
        %v272 = vcombine.low %v208, %v209
        %v273 = vcombine.high %v208, %v209
        %v274 = vcombine.low %v210, %v211
        %v275 = vcombine.high %v210, %v211
        %v276 = vcombine.low %v212, %v213
        %v277 = vcombine.high %v212, %v213
        %v278 = vcombine.low %v214, %v215
        %v279 = vcombine.high %v214, %v215
        %v280 = vcombine.low %v216, %v217
        %v281 = vcombine.high %v216, %v217
        %v282 = vcombine.low %v218, %v219
        %v283 = vcombine.high %v218, %v219
        %v284 = vcombine.low %v220, %v221
        %v285 = vcombine.high %v220, %v221
        %v286 = vcombine.low %v222, %v223
        %v287 = vcombine.high %v222, %v223
        %v288 = vcombine.low %v224, %v225
        %v289 = vcombine.high %v224, %v225
        %322 = vxpose.xlu0.b32.start [1/16] %v258, 128
        %323 = vxpose.xlu0.b32.cont [2/16] %v260, 128
        %324 = vxpose.xlu0.b32.cont [3/16] %v262, 128
        %325 = vxpose.xlu0.b32.cont [4/16] %v264, 128
        %326 = vxpose.xlu0.b32.cont [5/16] %v266, 128
        %327 = vxpose.xlu0.b32.cont [6/16] %v268, 128
        %328 = vxpose.xlu0.b32.cont [7/16] %v270, 128
        %329 = vxpose.xlu0.b32.cont [8/16] %v272, 128
        %330 = vxpose.xlu0.b32.cont [9/16] %v274, 128
        %331 = vxpose.xlu0.b32.cont [10/16] %v276, 128
        %332 = vxpose.xlu0.b32.cont [11/16] %v278, 128
        %333 = vxpose.xlu0.b32.cont [12/16] %v280, 128
        %334 = vxpose.xlu0.b32.cont [13/16] %v282, 128
        %335 = vxpose.xlu0.b32.cont [14/16] %v284, 128
        %336 = vxpose.xlu0.b32.cont [15/16] %v286, 128
        %337 = vxpose.xlu0.b32.end [16/16] %v288, 128
        %v338 = vpop.trf.xlu0
        %v339 = vpop.trf.xlu0
        %v340 = vpop.trf.xlu0
        %v341 = vpop.trf.xlu0
        %v342 = vpop.trf.xlu0
        %v343 = vpop.trf.xlu0
        %v344 = vpop.trf.xlu0
        %v345 = vpop.trf.xlu0
        %v346 = vpop.trf.xlu0
        %v347 = vpop.trf.xlu0
        %v348 = vpop.trf.xlu0
        %v349 = vpop.trf.xlu0
        %v350 = vpop.trf.xlu0
        %v351 = vpop.trf.xlu0
        %v352 = vpop.trf.xlu0
        %v353 = vpop.trf.xlu0
        %354 = vxpose.xlu0.b32.start [1/16] %v259, 128
        %355 = vxpose.xlu0.b32.cont [2/16] %v261, 128
        %356 = vxpose.xlu0.b32.cont [3/16] %v263, 128
        %357 = vxpose.xlu0.b32.cont [4/16] %v265, 128
        %358 = vxpose.xlu0.b32.cont [5/16] %v267, 128
        %359 = vxpose.xlu0.b32.cont [6/16] %v269, 128
        %360 = vxpose.xlu0.b32.cont [7/16] %v271, 128
        %361 = vxpose.xlu0.b32.cont [8/16] %v273, 128
        %362 = vxpose.xlu0.b32.cont [9/16] %v275, 128
        %363 = vxpose.xlu0.b32.cont [10/16] %v277, 128
        %364 = vxpose.xlu0.b32.cont [11/16] %v279, 128
        %365 = vxpose.xlu0.b32.cont [12/16] %v281, 128
        %366 = vxpose.xlu0.b32.cont [13/16] %v283, 128
        %367 = vxpose.xlu0.b32.cont [14/16] %v285, 128
        %368 = vxpose.xlu0.b32.cont [15/16] %v287, 128
        %369 = vxpose.xlu0.b32.end [16/16] %v289, 128
        %v370 = vpop.trf.xlu0
        %v371 = vpop.trf.xlu0
        %v372 = vpop.trf.xlu0
        %v373 = vpop.trf.xlu0
        %v374 = vpop.trf.xlu0
        %v375 = vpop.trf.xlu0
        %v376 = vpop.trf.xlu0
        %v377 = vpop.trf.xlu0
        %v378 = vpop.trf.xlu0
        %v379 = vpop.trf.xlu0
        %v380 = vpop.trf.xlu0
        %v381 = vpop.trf.xlu0
        %v382 = vpop.trf.xlu0
        %v383 = vpop.trf.xlu0
        %v384 = vpop.trf.xlu0
        %v385 = vpop.trf.xlu0
        %386 = vst [vmem:[%s192] sm:$0xff] %v338
        %387 = vst [vmem:[%s192 + $0x8] sm:$0xff] %v339
        %388 = vst [vmem:[%s192 + $0x10] sm:$0xff] %v340
        %389 = vst [vmem:[%s192 + $0x18] sm:$0xff] %v341
        %390 = vst [vmem:[%s192 + $0x20] sm:$0xff] %v342
        %391 = vst [vmem:[%s192 + $0x28] sm:$0xff] %v343
        %392 = vst [vmem:[%s192 + $0x30] sm:$0xff] %v344
        %393 = vst [vmem:[%s192 + $0x38] sm:$0xff] %v345
        %394 = vst [vmem:[%s192 + $0x40] sm:$0xff] %v346
        %395 = vst [vmem:[%s192 + $0x48] sm:$0xff] %v347
        %396 = vst [vmem:[%s192 + $0x50] sm:$0xff] %v348
        %397 = vst [vmem:[%s192 + $0x58] sm:$0xff] %v349
        %398 = vst [vmem:[%s192 + $0x60] sm:$0xff] %v350
        %399 = vst [vmem:[%s192 + $0x68] sm:$0xff] %v351
        %400 = vst [vmem:[%s192 + $0x70] sm:$0xff] %v352
        %401 = vst [vmem:[%s192 + $0x78] sm:$0xff] %v353
        %402 = vst [vmem:[%s192 + $0x80] sm:$0xff] %v370
        %403 = vst [vmem:[%s192 + $0x88] sm:$0xff] %v371
        %404 = vst [vmem:[%s192 + $0x90] sm:$0xff] %v372
        %405 = vst [vmem:[%s192 + $0x98] sm:$0xff] %v373
        %406 = vst [vmem:[%s192 + $0xa0] sm:$0xff] %v374
        %407 = vst [vmem:[%s192 + $0xa8] sm:$0xff] %v375
        %408 = vst [vmem:[%s192 + $0xb0] sm:$0xff] %v376
        %409 = vst [vmem:[%s192 + $0xb8] sm:$0xff] %v377
        %410 = vst [vmem:[%s192 + $0xc0] sm:$0xff] %v378
        %411 = vst [vmem:[%s192 + $0xc8] sm:$0xff] %v379
        %412 = vst [vmem:[%s192 + $0xd0] sm:$0xff] %v380
        %413 = vst [vmem:[%s192 + $0xd8] sm:$0xff] %v381
        %414 = vst [vmem:[%s192 + $0xe0] sm:$0xff] %v382
        %415 = vst [vmem:[%s192 + $0xe8] sm:$0xff] %v383
        %416 = vst [vmem:[%s192 + $0xf0] sm:$0xff] %v384
        %417 = vst [vmem:[%s192 + $0xf8] sm:$0xff] %v385
        %s418 = smul.u32 32, %s22
        %p419 = scmp.lt.s32.totalorder %s20, 1
        %s420 = scalar_select %p419, %s20, 1
        %p421 = scmp.lt.s32.totalorder %s418, 31
        %s422 = scalar_select %p421, %s418, 31
        %p423 = scmp.lt.s32.totalorder %s21, 0
        %s424 = scalar_select %p423, %s21, 0
        %s425 = sadd.s32 %s424, %s422
        %s426 = smul.addr %s420, 32
        %s427 = sadd.s32 %s425, %s426
        %s428 = smul.addr %s427, 8
        %s429 = scalar_lea.vmem %s1, %s428
        // Predicated region
        $region29: #{tpu_custom_call.1} parent=23 // pred_check
          %p430 = pneg %p86
        $region30: #{tpu_custom_call.1} parent=23 // pred_check_branch
          %432 = sbr.rel (%p430) target = $region32
        $region31: #{tpu_custom_call.1} parent=23 // pred_region
          %s433 = smul.u32 32, %s22
        $region32: #{tpu_custom_call.1} parent=23 // pred_fallthru
          _
      $region24: #{tpu_custom_call.1} parent=5 // pred_fallthru
        _
      %p434 = scmp.le.s32.totalorder 2, %s10
      // Predicated region
      $region33: #{tpu_custom_call.1} parent=5 // pred_check
        %p435 = pneg %p434
      $region34: #{tpu_custom_call.1} parent=5 // pred_check_branch
        %437 = sbr.rel (%p435) target = $region36
      $region35: #{tpu_custom_call.1} parent=5 // pred_region
        %s438 = ssub.s32 %s10, 2
        // Predicated region
        $region37: #{tpu_custom_call.1} parent=35 // pred_check
          %p439 = pneg %p92
        $region38: #{tpu_custom_call.1} parent=35 // pred_check_branch
          %441 = sbr.rel (%p439) target = $region40
        $region39: #{tpu_custom_call.1} parent=35 // pred_region
          %s442 = smul.u32 32, %s25
          %p443 = scmp.lt.s32.totalorder %s23, 1
          %s444 = scalar_select %p443, %s23, 1
          %p445 = scmp.lt.s32.totalorder %s442, 31
          %s446 = scalar_select %p445, %s442, 31
          %p447 = scmp.lt.s32.totalorder %s24, 0
          %s448 = scalar_select %p447, %s24, 0
          %s449 = sadd.s32 %s448, %s446
          %s450 = smul.addr %s444, 32
          %s451 = sadd.s32 %s449, %s450
          %s452 = smul.addr %s451, 8
          %s453 = scalar_lea.vmem %s1, %s452
        $region40: #{tpu_custom_call.1} parent=35 // pred_fallthru
          _
      $region36: #{tpu_custom_call.1} parent=5 // pred_fallthru
        _
    $region6: #{tpu_custom_call.1} parent=1 // loop_footer
      %s14 = sadd.s32 1, %s10
    $region7: #{tpu_custom_call.1} parent=1 // loop_footer_branch
      %9 = sbr.rel target = $region3
    $region8: #{tpu_custom_call.1} parent=1 // loop_exit
      _
    %454 = vsyncpa [#allocation3], 1
    %s455 = scalar_lea.sflag [#allocation3], 1
    %456 = vsyncpa %s455, 1

</llo_original>
